<compile_context>
chip_gen: v6e
topology: v6e:2x2x1
jax: 0.10.0
libtpu: 0.0.40
codegen_flags: <defaults>
</compile_context>

<pallas_src>
import jax
import jax.numpy as jnp
from jax import lax
from jax.experimental import pallas as pl
from jax.experimental.pallas import tpu as pltpu

EPS = 1e-4  # nn.BatchNorm2d(eps=0.0001) in the BNTT branch


def _make_bntt_kernel(t_blk, n_batch, hw_true, params_resident):
    """Kernel over an (t_blk, N, c_blk, HWp) block of x."""
    inv_n = 1.0 / float(n_batch * hw_true)   # true reduction size (unpadded)

    def kernel(x_ref, g_ref, b_ref, o_ref):
        xf = x_ref[...].astype(jnp.float32)

        # Batch-first reduction: VPU adds over N on the full lane width,
        # then a single cross-lane (XLU) reduce over HW per (t, c) row.
        s1 = jnp.sum(xf, axis=1, keepdims=True)               # (t,1,c,HWp)
        s2 = jnp.sum(jnp.square(xf), axis=1, keepdims=True)   # (t,1,c,HWp)
        s1 = jnp.sum(s1, axis=3, keepdims=True)               # (t,1,c,1)
        s2 = jnp.sum(s2, axis=3, keepdims=True)                # (t,1,c,1)

        mean = s1 * inv_n
        var = jnp.maximum(s2 * inv_n - mean * mean, 0.0)        # biased var
        inv = lax.rsqrt(var + EPS)

        if params_resident:
            # gamma/beta are whole (T, C) VMEM-resident arrays; slice by step.
            t0 = pl.multiple_of(pl.program_id(0) * t_blk, t_blk)
            g = g_ref[pl.ds(t0, t_blk), :]
            b = b_ref[pl.ds(t0, t_blk), :]
        else:
            g = g_ref[...]                                      # (t_blk,c_blk)
            b = b_ref[...]
        g = g.astype(jnp.float32)[:, None, :, None]             # (t,1,c,1)
        b = b.astype(jnp.float32)[:, None, :, None]

        scale = inv * g                                          # fold gamma
        shift = b - mean * scale
        # Re-read/re-cast x at the point of use so the stats temporaries can
        # die before the output expression is materialized.
        o_ref[...] = (x_ref[...].astype(jnp.float32) * scale
                      + shift).astype(o_ref.dtype)

    return kernel


def _divisors(n):
    return [d for d in range(1, n + 1) if n % d == 0]


def _per_elem_budget_bytes(itemsize):
    # in + out blocks, double-buffered (4x itemsize), plus block-sized f32
    # temporaries created in-kernel (cast / square / output expression).
    extra_f32_blocks = 2 if itemsize >= 4 else 3
    return 4 * itemsize + 4 * extra_f32_blocks


def _choose_blocks(T, N, C, HWp, itemsize, max_block_elems, want_grid_ge_2):
    """Pick (t_blk, c_blk). Prefer full-C (fully contiguous DMAs), shrink
    t_blk first; tile channels only when one full-C step cannot fit."""
    per_step = N * C * HWp                     # elems of one full-C time step
    if per_step <= max_block_elems:
        fit = [t for t in _divisors(T) if t * per_step <= max_block_elems]
        if want_grid_ge_2 and T > 1:
            # 2-TC parts: keep >= 2 (ideally an even number of) grid steps.
            pref = [t for t in fit if (T // t) >= 2 and (T // t) % 2 == 0]
            if not pref:
                pref = [t for t in fit if (T // t) >= 2]
            if pref:
                fit = pref
        return (max(fit) if fit else 1), C
    # A single full-C step does not fit: tile channels, dtype-aware alignment.
    align = {4: 8, 2: 16, 1: 32}.get(itemsize, 8)
    c_divs = _divisors(C)
    aligned = [d for d in c_divs if d % align == 0 or d == C]
    fit = [d for d in (aligned or c_divs) if N * d * HWp <= max_block_elems]
    if not fit:
        fit = [d for d in c_divs if N * d * HWp <= max_block_elems] or [1]
    return 1, max(fit)


def spiking_bntt_norm(x, gamma, beta):
    """x: [T, N, C, H, W]; gamma, beta: [T, C] (one BatchNorm2d per step)."""
    T, N, C, H, W = x.shape
    HW = H * W
    HWp = ((HW + 127) // 128) * 128            # lane-dense spatial axis
    itemsize = jnp.dtype(x.dtype).itemsize

    # Generation-aware VMEM budget (v7x-class: 64 MiB physical per TC;
    # v5e/v6e: 128 MiB).
    try:
        phys_vmem = int(pltpu.get_tpu_info().vmem_capacity_bytes)
    except Exception:
        phys_vmem = 128 << 20
    small_vmem = phys_vmem <= (64 << 20)
    if small_vmem:
        vmem_budget = 48 << 20
    else:
        vmem_budget = min(96 << 20, max(phys_vmem - (16 << 20), 32 << 20))
    headroom = 4 << 20
    max_block_elems = max(
        (vmem_budget - headroom) // _per_elem_budget_bytes(itemsize),
        N * 128)

    # Free (contiguous) reshapes; zero-pad HW to a 128 multiple only if needed.
    x4 = x.reshape(T, N, C, HW)
    if HWp != HW:
        x4 = jnp.pad(x4, ((0, 0), (0, 0), (0, 0), (0, HWp - HW)))
    g2 = gamma.reshape(T, C)
    b2 = beta.reshape(T, C)

    t_blk, c_blk = _choose_blocks(T, N, C, HWp, itemsize, max_block_elems,
                                  want_grid_ge_2=small_vmem)
    grid = (T // t_blk, C // c_blk)
    params_resident = (c_blk == C)

    kernel = _make_bntt_kernel(t_blk, N, HW, params_resident)

    if params_resident:
        # Whole (T, C) array as one block with a constant index_map: fetched
        # once, stays VMEM-resident across all grid steps.
        g_spec = pl.BlockSpec((T, C), lambda t, c: (0, 0))
        b_spec = pl.BlockSpec((T, C), lambda t, c: (0, 0))
    else:
        g_spec = pl.BlockSpec((t_blk, c_blk), lambda t, c: (t, c))
        b_spec = pl.BlockSpec((t_blk, c_blk), lambda t, c: (t, c))

    block_elems = t_blk * N * c_blk * HWp
    usage = block_elems * _per_elem_budget_bytes(itemsize) + (1 << 20)
    vmem_limit = int(min(max(usage + headroom, 16 << 20), vmem_budget))

    out4 = pl.pallas_call(
        kernel,
        out_shape=jax.ShapeDtypeStruct((T, N, C, HWp), x.dtype),
        grid_spec=pltpu.PrefetchScalarGridSpec(
            num_scalar_prefetch=0,
            grid=grid,
            in_specs=[
                pl.BlockSpec((t_blk, N, c_blk, HWp),
                             lambda t, c: (t, 0, c, 0)),
                g_spec,
                b_spec,
            ],
            out_specs=pl.BlockSpec((t_blk, N, c_blk, HWp),
                                   lambda t, c: (t, 0, c, 0)),
        ),
        compiler_params=pltpu.CompilerParams(
            dimension_semantics=("parallel", "parallel"),
            vmem_limit_bytes=vmem_limit),
    )(x4, g2, b2)

    if HWp != HW:
        out4 = out4[..., :HW]
    return out4.reshape(T, N, C, H, W)


if __name__ == "__main__":
    # Small shapes consistent with the module: num_steps=8, batch=2,
    # out_channels=16, spatial 16x16.
    T, N, C, H, W = 8, 2, 16, 16, 16
    key = jax.random.PRNGKey(0)
    k1, k2, k3 = jax.random.split(key, 3)

    x = jax.random.normal(k1, (T, N, C, H, W), dtype=jnp.float32)
    # Deterministic synthetic per-step affine params (BatchNorm2d weight/bias).
    gamma = 1.0 + 0.1 * jax.random.normal(k2, (T, C), dtype=jnp.float32)
    beta = 0.1 * jax.random.normal(k3, (T, C), dtype=jnp.float32)

    out = spiking_bntt_norm(x, gamma, beta)
    out = jax.block_until_ready(out)

    # Pure-JAX reference (training-mode BatchNorm2d per time step).
    mean = jnp.mean(x, axis=(1, 3, 4), keepdims=True)
    var = jnp.mean((x - mean) ** 2, axis=(1, 3, 4), keepdims=True)
    ref = ((x - mean) / jnp.sqrt(var + EPS)) * gamma[:, None, :, None, None] \
        + beta[:, None, :, None, None]

    assert out.shape == x.shape and out.dtype == x.dtype
    assert jnp.allclose(out, ref, atol=5e-4, rtol=5e-4), \
        float(jnp.max(jnp.abs(out - ref)))
    print("KERNEL_OK")
</pallas_src>

<mosaic_0001>
module attributes {stable_mosaic.version = 11 : i64} {
  func.func @kernel(%arg0: i32, %arg1: i32, %arg2: memref<8x2x16x256xf32, #tpu.memory_space<vmem>>, %arg3: memref<8x16xf32, #tpu.memory_space<vmem>>, %arg4: memref<8x16xf32, #tpu.memory_space<vmem>>, %arg5: memref<8x2x16x256xf32, #tpu.memory_space<vmem>>) attributes {dimension_semantics = [#tpu.dimension_semantics<parallel>, #tpu.dimension_semantics<parallel>], iteration_bounds = array<i64: 1, 1>, scalar_prefetch = 0 : i64, scratch_operands = 0 : i64, tpu.core_type = #tpu.core_type<tc>, window_params = [{transform_indices = @transform_0, window_bounds = array<i64: 8, 2, 16, 256>}, {pipeline_mode = #tpu.pipeline_mode<synchronous>, transform_indices = @transform_1, window_bounds = array<i64: 8, 16>}, {pipeline_mode = #tpu.pipeline_mode<synchronous>, transform_indices = @transform_2, window_bounds = array<i64: 8, 16>}, {transform_indices = @transform_3, window_bounds = array<i64: 8, 2, 16, 256>}]} {
    %c0 = arith.constant 0 : index
    %c0_0 = arith.constant 0 : index
    %c0_1 = arith.constant 0 : index
    %c0_2 = arith.constant 0 : index
    %0 = vector.load %arg2[%c0, %c0_0, %c0_1, %c0_2] : memref<8x2x16x256xf32, #tpu.memory_space<vmem>>, vector<8x2x16x256xf32>
    %cst = arith.constant dense<0.000000e+00> : vector<8x16x256xf32>
    %1 = vector.multi_reduction <add>, %0, %cst [1] : vector<8x2x16x256xf32> to vector<8x16x256xf32>
    %2 = vector.shape_cast %1 : vector<8x16x256xf32> to vector<8x1x16x256xf32>
    %3 = arith.mulf %0, %0 : vector<8x2x16x256xf32>
    %cst_3 = arith.constant dense<0.000000e+00> : vector<8x16x256xf32>
    %4 = vector.multi_reduction <add>, %3, %cst_3 [1] : vector<8x2x16x256xf32> to vector<8x16x256xf32>
    %5 = vector.shape_cast %4 : vector<8x16x256xf32> to vector<8x1x16x256xf32>
    %cst_4 = arith.constant dense<0.000000e+00> : vector<8x1x16xf32>
    %6 = vector.multi_reduction <add>, %2, %cst_4 [3] : vector<8x1x16x256xf32> to vector<8x1x16xf32>
    %7 = vector.shape_cast %6 : vector<8x1x16xf32> to vector<8x1x16x1xf32>
    %cst_5 = arith.constant dense<0.000000e+00> : vector<8x1x16xf32>
    %8 = vector.multi_reduction <add>, %5, %cst_5 [3] : vector<8x1x16x256xf32> to vector<8x1x16xf32>
    %9 = vector.shape_cast %8 : vector<8x1x16xf32> to vector<8x1x16x1xf32>
    %cst_6 = arith.constant 0.001953125 : f32
    %10 = vector.broadcast %cst_6 : f32 to vector<8x1x16x1xf32>
    %11 = arith.mulf %7, %10 : vector<8x1x16x1xf32>
    %cst_7 = arith.constant 0.001953125 : f32
    %12 = vector.broadcast %cst_7 : f32 to vector<8x1x16x1xf32>
    %13 = arith.mulf %9, %12 : vector<8x1x16x1xf32>
    %14 = arith.mulf %11, %11 : vector<8x1x16x1xf32>
    %15 = arith.subf %13, %14 : vector<8x1x16x1xf32>
    %cst_8 = arith.constant 0.000000e+00 : f32
    %16 = vector.broadcast %cst_8 : f32 to vector<8x1x16x1xf32>
    %17 = arith.maximumf %15, %16 : vector<8x1x16x1xf32>
    %cst_9 = arith.constant 9.99999974E-5 : f32
    %18 = vector.broadcast %cst_9 : f32 to vector<8x1x16x1xf32>
    %19 = arith.addf %17, %18 : vector<8x1x16x1xf32>
    %20 = math.rsqrt %19 : vector<8x1x16x1xf32>
    %c8_i32 = arith.constant 8 : i32
    %21 = arith.muli %arg0, %c8_i32 : i32
    %22 = tpu.assume_multiple %21, 8 : i32
    %23 = arith.index_cast %22 : i32 to index
    %c0_10 = arith.constant 0 : index
    %24 = vector.load %arg3[%23, %c0_10] : memref<8x16xf32, #tpu.memory_space<vmem>>, vector<8x16xf32>
    %25 = arith.index_cast %22 : i32 to index
    %c0_11 = arith.constant 0 : index
    %26 = vector.load %arg4[%25, %c0_11] : memref<8x16xf32, #tpu.memory_space<vmem>>, vector<8x16xf32>
    %27 = vector.shape_cast %24 : vector<8x16xf32> to vector<8x1x16x1xf32>
    %28 = vector.shape_cast %26 : vector<8x16xf32> to vector<8x1x16x1xf32>
    %29 = arith.mulf %20, %27 : vector<8x1x16x1xf32>
    %30 = arith.mulf %11, %29 : vector<8x1x16x1xf32>
    %31 = arith.subf %28, %30 : vector<8x1x16x1xf32>
    %c0_12 = arith.constant 0 : index
    %c0_13 = arith.constant 0 : index
    %c0_14 = arith.constant 0 : index
    %c0_15 = arith.constant 0 : index
    %32 = vector.load %arg2[%c0_12, %c0_13, %c0_14, %c0_15] : memref<8x2x16x256xf32, #tpu.memory_space<vmem>>, vector<8x2x16x256xf32>
    %33 = vector.broadcast %29 : vector<8x1x16x1xf32> to vector<8x2x16x256xf32>
    %34 = arith.mulf %32, %33 : vector<8x2x16x256xf32>
    %35 = vector.broadcast %31 : vector<8x1x16x1xf32> to vector<8x2x16x256xf32>
    %36 = arith.addf %34, %35 : vector<8x2x16x256xf32>
    %c0_16 = arith.constant 0 : index
    %c0_17 = arith.constant 0 : index
    %c0_18 = arith.constant 0 : index
    %c0_19 = arith.constant 0 : index
    %37 = vector.load %arg5[%c0_16, %c0_17, %c0_18, %c0_19] : memref<8x2x16x256xf32, #tpu.memory_space<vmem>>, vector<8x2x16x256xf32>
    tpu.vector_store %arg5[%c0_16, %c0_17, %c0_18, %c0_19], %36 {strides = array<i32>} : memref<8x2x16x256xf32, #tpu.memory_space<vmem>>, vector<8x2x16x256xf32>,
    return
  }
  func.func @transform_0(%arg0: i32, %arg1: i32) -> (i32, i32, i32, i32) {
    %c0_i32 = arith.constant 0 : i32
    %c0_i32_0 = arith.constant 0 : i32
    %c0_i32_1 = arith.constant 0 : i32
    return %arg0, %c0_i32, %arg1, %c0_i32_0 : i32, i32, i32, i32
  }
  func.func @transform_1(%arg0: i32, %arg1: i32) -> (i32, i32) {
    %c0_i32 = arith.constant 0 : i32
    %c0_i32_0 = arith.constant 0 : i32
    %c0_i32_1 = arith.constant 0 : i32
    return %c0_i32, %c0_i32_0 : i32, i32
  }
  func.func @transform_2(%arg0: i32, %arg1: i32) -> (i32, i32) {
    %c0_i32 = arith.constant 0 : i32
    %c0_i32_0 = arith.constant 0 : i32
    %c0_i32_1 = arith.constant 0 : i32
    return %c0_i32, %c0_i32_0 : i32, i32
  }
  func.func @transform_3(%arg0: i32, %arg1: i32) -> (i32, i32, i32, i32) {
    %c0_i32 = arith.constant 0 : i32
    %c0_i32_0 = arith.constant 0 : i32
    %c0_i32_1 = arith.constant 0 : i32
    return %arg0, %c0_i32, %arg1, %c0_i32_0 : i32, i32, i32, i32
  }
}

</mosaic_0001>

<llo_original>
// kernel: tpu_custom_call.1
$region0: #{tpu_custom_call.1}
  #allocation0 [shape = 'u32[]', space=smem, size = 0x4, offset = 0x4, fixed_abs, tag = 'smem constant byte address 0x4 - core index']
  #allocation1 [shape = 'u32[144,128]{1,0:T(1,128)}', space=vmem, size = 0x12000, scoped, tag = 'internal scratch']
  %s0 = inlined_call_operand.hbm [shape: f32[8,2,16,256], index: 0, kind: input, shape index: {}]
  %s1 = inlined_call_operand.hbm [shape: f32[8,16], index: 1, kind: input, shape index: {}]
  %s2 = inlined_call_operand.hbm [shape: f32[8,16], index: 2, kind: input, shape index: {}]
  %s3 = inlined_call_operand.hbm [shape: f32[8,2,16,256], index: 3, kind: output, shape index: {}]
  %s4 = sld [smem:[#allocation0]]
  $region34: #{tpu_custom_call.1} parent=0
    _
  %s6 = ssub.s32 1, %s4
  %s7 = scalar_select 0, %s6, %s4
  $region1: #{tpu_custom_call.1} parent=0
    #allocation2 [shape = 'u8[262144]{0}', space=vmem, size = 0x40000, scoped, tag = 'input window, operand 0, single buffered']
    #allocation3 [shape = 's32[1]{0}', space=sflag, size = 0x4, scoped, tag = 'scoped memory for tpu_custom_call.1']
    #allocation4 [shape = 's32[1]{0}', space=sflag, size = 0x4, scoped, tag = 'scoped memory for tpu_custom_call.1']
    #allocation5 [shape = 'u8[4096]{0}', space=vmem, size = 0x1000, scoped, tag = 'input window, operand 1, single buffered']
    #allocation6 [shape = 's32[1]{0}', space=sflag, size = 0x4, scoped, tag = 'scoped memory for tpu_custom_call.1']
    #allocation7 [shape = 'u8[4096]{0}', space=vmem, size = 0x1000, scoped, tag = 'input window, operand 2, single buffered']
    #allocation8 [shape = 'u8[262144]{0}', space=vmem, size = 0x40000, scoped, tag = 'output window, operand 0, single buffered']
    %8 = vsyncpa [#allocation3], 0
    %9 = vsyncpa [#allocation6], 0
    %10 = vsyncpa [#allocation4], 0
    // Predicated region
    $region2: #{tpu_custom_call.1} parent=1 // pred_check
      _
    $region3: #{tpu_custom_call.1} parent=1 // pred_check_branch
      %12 = sbr.rel (0) target = $region5
    $region4: #{tpu_custom_call.1} parent=1 // pred_region
      %s14 = ssub.s32 8192, 8192
      %15 = vsyncadd [#allocation3], %s14
      %s16 = sshll.u32 [#allocation2], 4
      %s17 = int_to_ptr.vmem [resolvable:$true] %s16
      %22 = dma.hbm_to_vmem [thread:$0]  %s0, 8192, %s17, [#allocation3], 256, 256, 16
    $region5: #{tpu_custom_call.1} parent=1 // pred_fallthru
      _
    // Predicated region
    $region6: #{tpu_custom_call.1} parent=1 // pred_check
      _
    $region7: #{tpu_custom_call.1} parent=1 // pred_check_branch
      %24 = sbr.rel (0) target = $region9
    $region8: #{tpu_custom_call.1} parent=1 // pred_region
      %s26 = ssub.s32 128, 128
      %27 = vsyncadd [#allocation6], %s26
      %s29 = sshll.u32 [#allocation5], 4
      %s30 = int_to_ptr.vmem [resolvable:$true] %s29
      %32 = dma.hbm_to_vmem [thread:$0]  %s1, 128, %s30, [#allocation6]
    $region9: #{tpu_custom_call.1} parent=1 // pred_fallthru
      _
    // Predicated region
    $region10: #{tpu_custom_call.1} parent=1 // pred_check
      _
    $region11: #{tpu_custom_call.1} parent=1 // pred_check_branch
      %34 = sbr.rel (0) target = $region13
    $region12: #{tpu_custom_call.1} parent=1 // pred_region
      %s36 = ssub.s32 128, 128
      %37 = vsyncadd [#allocation6], %s36
      %s39 = sshll.u32 [#allocation7], 4
      %s40 = int_to_ptr.vmem [resolvable:$true] %s39
      %42 = dma.hbm_to_vmem [thread:$0]  %s2, 128, %s40, [#allocation6]
    $region13: #{tpu_custom_call.1} parent=1 // pred_fallthru
      _
    // Predicated region
    $region14: #{tpu_custom_call.1} parent=1 // pred_check
      _
    $region15: #{tpu_custom_call.1} parent=1 // pred_check_branch
      %44 = sbr.rel (0) target = $region17
    $region16: #{tpu_custom_call.1} parent=1 // pred_region
      %45 = dma.done [#allocation3], 8192
    $region17: #{tpu_custom_call.1} parent=1 // pred_fallthru
      _
    // Predicated region
    $region18: #{tpu_custom_call.1} parent=1 // pred_check
      _
    $region19: #{tpu_custom_call.1} parent=1 // pred_check_branch
      %47 = sbr.rel (0) target = $region21
    $region20: #{tpu_custom_call.1} parent=1 // pred_region
      %48 = dma.done [#allocation6], 128
    $region21: #{tpu_custom_call.1} parent=1 // pred_fallthru
      _
    // Predicated region
    $region22: #{tpu_custom_call.1} parent=1 // pred_check
      _
    $region23: #{tpu_custom_call.1} parent=1 // pred_check_branch
      %50 = sbr.rel (0) target = $region25
    $region24: #{tpu_custom_call.1} parent=1 // pred_region
      %51 = dma.done [#allocation6], 128
    $region25: #{tpu_custom_call.1} parent=1 // pred_fallthru
      _
    %v52 = vld [vmem:[#allocation2] sm:$0xff]
    %v53 = vld [vmem:[#allocation2 + $0x8] sm:$0xff]
    %v54 = vld [vmem:[#allocation2 + $0x10] sm:$0xff]
    %v55 = vld [vmem:[#allocation2 + $0x18] sm:$0xff]
    %v56 = vld [vmem:[#allocation2 + $0x20] sm:$0xff]
    %v57 = vld [vmem:[#allocation2 + $0x28] sm:$0xff]
    %v58 = vld [vmem:[#allocation2 + $0x30] sm:$0xff]
    %v59 = vld [vmem:[#allocation2 + $0x38] sm:$0xff]
    %v60 = vld [vmem:[#allocation2 + $0x40] sm:$0xff]
    %v61 = vld [vmem:[#allocation2 + $0x48] sm:$0xff]
    %v62 = vld [vmem:[#allocation2 + $0x50] sm:$0xff]
    %v63 = vld [vmem:[#allocation2 + $0x58] sm:$0xff]
    %v64 = vld [vmem:[#allocation2 + $0x60] sm:$0xff]
    %v65 = vld [vmem:[#allocation2 + $0x68] sm:$0xff]
    %v66 = vld [vmem:[#allocation2 + $0x70] sm:$0xff]
    %v67 = vld [vmem:[#allocation2 + $0x78] sm:$0xff]
    %v68 = vld [vmem:[#allocation2 + $0x80] sm:$0xff]
    %v69 = vld [vmem:[#allocation2 + $0x88] sm:$0xff]
    %v70 = vld [vmem:[#allocation2 + $0x90] sm:$0xff]
    %v71 = vld [vmem:[#allocation2 + $0x98] sm:$0xff]
    %v72 = vld [vmem:[#allocation2 + $0xa0] sm:$0xff]
    %v73 = vld [vmem:[#allocation2 + $0xa8] sm:$0xff]
    %v74 = vld [vmem:[#allocation2 + $0xb0] sm:$0xff]
    %v75 = vld [vmem:[#allocation2 + $0xb8] sm:$0xff]
    %v76 = vld [vmem:[#allocation2 + $0xc0] sm:$0xff]
    %v77 = vld [vmem:[#allocation2 + $0xc8] sm:$0xff]
    %v78 = vld [vmem:[#allocation2 + $0xd0] sm:$0xff]
    %v79 = vld [vmem:[#allocation2 + $0xd8] sm:$0xff]
    %v80 = vld [vmem:[#allocation2 + $0xe0] sm:$0xff]
    %v81 = vld [vmem:[#allocation2 + $0xe8] sm:$0xff]
    %v82 = vld [vmem:[#allocation2 + $0xf0] sm:$0xff]
    %v83 = vld [vmem:[#allocation2 + $0xf8] sm:$0xff]
    %v84 = vld [vmem:[#allocation2 + $0x100] sm:$0xff]
    %v85 = vld [vmem:[#allocation2 + $0x108] sm:$0xff]
    %v86 = vld [vmem:[#allocation2 + $0x110] sm:$0xff]
    %v87 = vld [vmem:[#allocation2 + $0x118] sm:$0xff]
    %v88 = vld [vmem:[#allocation2 + $0x120] sm:$0xff]
    %v89 = vld [vmem:[#allocation2 + $0x128] sm:$0xff]
    %v90 = vld [vmem:[#allocation2 + $0x130] sm:$0xff]
    %v91 = vld [vmem:[#allocation2 + $0x138] sm:$0xff]
    %v92 = vld [vmem:[#allocation2 + $0x140] sm:$0xff]
    %v93 = vld [vmem:[#allocation2 + $0x148] sm:$0xff]
    %v94 = vld [vmem:[#allocation2 + $0x150] sm:$0xff]
    %v95 = vld [vmem:[#allocation2 + $0x158] sm:$0xff]
    %v96 = vld [vmem:[#allocation2 + $0x160] sm:$0xff]
    %v97 = vld [vmem:[#allocation2 + $0x168] sm:$0xff]
    %v98 = vld [vmem:[#allocation2 + $0x170] sm:$0xff]
    %v99 = vld [vmem:[#allocation2 + $0x178] sm:$0xff]
    %v100 = vld [vmem:[#allocation2 + $0x180] sm:$0xff]
    %v101 = vld [vmem:[#allocation2 + $0x188] sm:$0xff]
    %v102 = vld [vmem:[#allocation2 + $0x190] sm:$0xff]
    %v103 = vld [vmem:[#allocation2 + $0x198] sm:$0xff]
    %v104 = vld [vmem:[#allocation2 + $0x1a0] sm:$0xff]
    %v105 = vld [vmem:[#allocation2 + $0x1a8] sm:$0xff]
    %v106 = vld [vmem:[#allocation2 + $0x1b0] sm:$0xff]
    %v107 = vld [vmem:[#allocation2 + $0x1b8] sm:$0xff]
    %v108 = vld [vmem:[#allocation2 + $0x1c0] sm:$0xff]
    %v109 = vld [vmem:[#allocation2 + $0x1c8] sm:$0xff]
    %v110 = vld [vmem:[#allocation2 + $0x1d0] sm:$0xff]
    %v111 = vld [vmem:[#allocation2 + $0x1d8] sm:$0xff]
    %v112 = vld [vmem:[#allocation2 + $0x1e0] sm:$0xff]
    %v113 = vld [vmem:[#allocation2 + $0x1e8] sm:$0xff]
    %v114 = vld [vmem:[#allocation2 + $0x1f0] sm:$0xff]
    %v115 = vld [vmem:[#allocation2 + $0x1f8] sm:$0xff]
    %v116 = vadd.f32 %v52, %v56
    %v117 = vadd.f32 %v53, %v57
    %v118 = vadd.f32 %v54, %v58
    %v119 = vadd.f32 %v55, %v59
    %v120 = vadd.f32 %v60, %v64
    %v121 = vadd.f32 %v61, %v65
    %v122 = vadd.f32 %v62, %v66
    %v123 = vadd.f32 %v63, %v67
    %v124 = vadd.f32 %v68, %v72
    %v125 = vadd.f32 %v69, %v73
    %v126 = vadd.f32 %v70, %v74
    %v127 = vadd.f32 %v71, %v75
    %v128 = vadd.f32 %v76, %v80
    %v129 = vadd.f32 %v77, %v81
    %v130 = vadd.f32 %v78, %v82
    %v131 = vadd.f32 %v79, %v83
    %v132 = vadd.f32 %v84, %v88
    %v133 = vadd.f32 %v85, %v89
    %v134 = vadd.f32 %v86, %v90
    %v135 = vadd.f32 %v87, %v91
    %v136 = vadd.f32 %v92, %v96
    %v137 = vadd.f32 %v93, %v97
    %v138 = vadd.f32 %v94, %v98
    %v139 = vadd.f32 %v95, %v99
    %v140 = vadd.f32 %v100, %v104
    %v141 = vadd.f32 %v101, %v105
    %v142 = vadd.f32 %v102, %v106
    %v143 = vadd.f32 %v103, %v107
    %v144 = vadd.f32 %v108, %v112
    %v145 = vadd.f32 %v109, %v113
    %v146 = vadd.f32 %v110, %v114
    %v147 = vadd.f32 %v111, %v115
    %v148 = vmul.f32 %v52, %v52
    %v149 = vmul.f32 %v53, %v53
    %v150 = vmul.f32 %v54, %v54
    %v151 = vmul.f32 %v55, %v55
    %v152 = vmul.f32 %v56, %v56
    %v153 = vmul.f32 %v57, %v57
    %v154 = vmul.f32 %v58, %v58
    %v155 = vmul.f32 %v59, %v59
    %v156 = vmul.f32 %v60, %v60
    %v157 = vmul.f32 %v61, %v61
    %v158 = vmul.f32 %v62, %v62
    %v159 = vmul.f32 %v63, %v63
    %v160 = vmul.f32 %v64, %v64
    %v161 = vmul.f32 %v65, %v65
    %v162 = vmul.f32 %v66, %v66
    %v163 = vmul.f32 %v67, %v67
    %v164 = vmul.f32 %v68, %v68
    %v165 = vmul.f32 %v69, %v69
    %v166 = vmul.f32 %v70, %v70
    %v167 = vmul.f32 %v71, %v71
    %v168 = vmul.f32 %v72, %v72
    %v169 = vmul.f32 %v73, %v73
    %v170 = vmul.f32 %v74, %v74
    %v171 = vmul.f32 %v75, %v75
    %v172 = vmul.f32 %v76, %v76
    %v173 = vmul.f32 %v77, %v77
    %v174 = vmul.f32 %v78, %v78
    %v175 = vmul.f32 %v79, %v79
    %v176 = vmul.f32 %v80, %v80
    %v177 = vmul.f32 %v81, %v81
    %v178 = vmul.f32 %v82, %v82
    %v179 = vmul.f32 %v83, %v83
    %v180 = vmul.f32 %v84, %v84
    %v181 = vmul.f32 %v85, %v85
    %v182 = vmul.f32 %v86, %v86
    %v183 = vmul.f32 %v87, %v87
    %v184 = vmul.f32 %v88, %v88
    %v185 = vmul.f32 %v89, %v89
    %v186 = vmul.f32 %v90, %v90
    %v187 = vmul.f32 %v91, %v91
    %v188 = vmul.f32 %v92, %v92
    %v189 = vmul.f32 %v93, %v93
    %v190 = vmul.f32 %v94, %v94
    %v191 = vmul.f32 %v95, %v95
    %v192 = vmul.f32 %v96, %v96
    %v193 = vmul.f32 %v97, %v97
    %v194 = vmul.f32 %v98, %v98
    %v195 = vmul.f32 %v99, %v99
    %v196 = vmul.f32 %v100, %v100
    %v197 = vmul.f32 %v101, %v101
    %v198 = vmul.f32 %v102, %v102
    %v199 = vmul.f32 %v103, %v103
    %v200 = vmul.f32 %v104, %v104
    %v201 = vmul.f32 %v105, %v105
    %v202 = vmul.f32 %v106, %v106
    %v203 = vmul.f32 %v107, %v107
    %v204 = vmul.f32 %v108, %v108
    %v205 = vmul.f32 %v109, %v109
    %v206 = vmul.f32 %v110, %v110
    %v207 = vmul.f32 %v111, %v111
    %v208 = vmul.f32 %v112, %v112
    %v209 = vmul.f32 %v113, %v113
    %v210 = vmul.f32 %v114, %v114
    %v211 = vmul.f32 %v115, %v115
    %v212 = vadd.f32 %v148, %v152
    %v213 = vadd.f32 %v149, %v153
    %v214 = vadd.f32 %v150, %v154
    %v215 = vadd.f32 %v151, %v155
    %v216 = vadd.f32 %v156, %v160
    %v217 = vadd.f32 %v157, %v161
    %v218 = vadd.f32 %v158, %v162
    %v219 = vadd.f32 %v159, %v163
    %v220 = vadd.f32 %v164, %v168
    %v221 = vadd.f32 %v165, %v169
    %v222 = vadd.f32 %v166, %v170
    %v223 = vadd.f32 %v167, %v171
    %v224 = vadd.f32 %v172, %v176
    %v225 = vadd.f32 %v173, %v177
    %v226 = vadd.f32 %v174, %v178
    %v227 = vadd.f32 %v175, %v179
    %v228 = vadd.f32 %v180, %v184
    %v229 = vadd.f32 %v181, %v185
    %v230 = vadd.f32 %v182, %v186
    %v231 = vadd.f32 %v183, %v187
    %v232 = vadd.f32 %v188, %v192
    %v233 = vadd.f32 %v189, %v193
    %v234 = vadd.f32 %v190, %v194
    %v235 = vadd.f32 %v191, %v195
    %v236 = vadd.f32 %v196, %v200
    %v237 = vadd.f32 %v197, %v201
    %v238 = vadd.f32 %v198, %v202
    %v239 = vadd.f32 %v199, %v203
    %v240 = vadd.f32 %v204, %v208
    %v241 = vadd.f32 %v205, %v209
    %v242 = vadd.f32 %v206, %v210
    %v243 = vadd.f32 %v207, %v211
    %v244 = vadd.f32 %v116, %v117
    %245 = vadd.xlane.f32.xlu0 %v244
    %v246 = vpop.xlane.xlu0 %245
    %v247 = vadd.f32 %v118, %v119
    %248 = vadd.xlane.f32.xlu0 %v247
    %v249 = vpop.xlane.xlu0 %248
    %v250 = vadd.f32 %v120, %v121
    %251 = vadd.xlane.f32.xlu0 %v250
    %v252 = vpop.xlane.xlu0 %251
    %v253 = vadd.f32 %v122, %v123
    %254 = vadd.xlane.f32.xlu0 %v253
    %v255 = vpop.xlane.xlu0 %254
    %v256 = vadd.f32 %v124, %v125
    %257 = vadd.xlane.f32.xlu0 %v256
    %v258 = vpop.xlane.xlu0 %257
    %v259 = vadd.f32 %v126, %v127
    %260 = vadd.xlane.f32.xlu0 %v259
    %v261 = vpop.xlane.xlu0 %260
    %v262 = vadd.f32 %v128, %v129
    %263 = vadd.xlane.f32.xlu0 %v262
    %v264 = vpop.xlane.xlu0 %263
    %v265 = vadd.f32 %v130, %v131
    %266 = vadd.xlane.f32.xlu0 %v265
    %v267 = vpop.xlane.xlu0 %266
    %v268 = vadd.f32 %v132, %v133
    %269 = vadd.xlane.f32.xlu0 %v268
    %v270 = vpop.xlane.xlu0 %269
    %v271 = vadd.f32 %v134, %v135
    %272 = vadd.xlane.f32.xlu0 %v271
    %v273 = vpop.xlane.xlu0 %272
    %v274 = vadd.f32 %v136, %v137
    %275 = vadd.xlane.f32.xlu0 %v274
    %v276 = vpop.xlane.xlu0 %275
    %v277 = vadd.f32 %v138, %v139
    %278 = vadd.xlane.f32.xlu0 %v277
    %v279 = vpop.xlane.xlu0 %278
    %v280 = vadd.f32 %v140, %v141
    %281 = vadd.xlane.f32.xlu0 %v280
    %v282 = vpop.xlane.xlu0 %281
    %v283 = vadd.f32 %v142, %v143
    %284 = vadd.xlane.f32.xlu0 %v283
    %v285 = vpop.xlane.xlu0 %284
    %v286 = vadd.f32 %v144, %v145
    %287 = vadd.xlane.f32.xlu0 %v286
    %v288 = vpop.xlane.xlu0 %287
    %v289 = vadd.f32 %v146, %v147
    %290 = vadd.xlane.f32.xlu0 %v289
    %v291 = vpop.xlane.xlu0 %290
    %v292 = vadd.f32 %v212, %v213
    %293 = vadd.xlane.f32.xlu0 %v292
    %v294 = vpop.xlane.xlu0 %293
    %v295 = vadd.f32 %v214, %v215
    %296 = vadd.xlane.f32.xlu0 %v295
    %v297 = vpop.xlane.xlu0 %296
    %v298 = vadd.f32 %v216, %v217
    %299 = vadd.xlane.f32.xlu0 %v298
    %v300 = vpop.xlane.xlu0 %299
    %v301 = vadd.f32 %v218, %v219
    %302 = vadd.xlane.f32.xlu0 %v301
    %v303 = vpop.xlane.xlu0 %302
    %v304 = vadd.f32 %v220, %v221
    %305 = vadd.xlane.f32.xlu0 %v304
    %v306 = vpop.xlane.xlu0 %305
    %v307 = vadd.f32 %v222, %v223
    %308 = vadd.xlane.f32.xlu0 %v307
    %v309 = vpop.xlane.xlu0 %308
    %v310 = vadd.f32 %v224, %v225
    %311 = vadd.xlane.f32.xlu0 %v310
    %v312 = vpop.xlane.xlu0 %311
    %v313 = vadd.f32 %v226, %v227
    %314 = vadd.xlane.f32.xlu0 %v313
    %v315 = vpop.xlane.xlu0 %314
    %v316 = vadd.f32 %v228, %v229
    %317 = vadd.xlane.f32.xlu0 %v316
    %v318 = vpop.xlane.xlu0 %317
    %v319 = vadd.f32 %v230, %v231
    %320 = vadd.xlane.f32.xlu0 %v319
    %v321 = vpop.xlane.xlu0 %320
    %v322 = vadd.f32 %v232, %v233
    %323 = vadd.xlane.f32.xlu0 %v322
    %v324 = vpop.xlane.xlu0 %323
    %v325 = vadd.f32 %v234, %v235
    %326 = vadd.xlane.f32.xlu0 %v325
    %v327 = vpop.xlane.xlu0 %326
    %v328 = vadd.f32 %v236, %v237
    %329 = vadd.xlane.f32.xlu0 %v328
    %v330 = vpop.xlane.xlu0 %329
    %v331 = vadd.f32 %v238, %v239
    %332 = vadd.xlane.f32.xlu0 %v331
    %v333 = vpop.xlane.xlu0 %332
    %v334 = vadd.f32 %v240, %v241
    %335 = vadd.xlane.f32.xlu0 %v334
    %v336 = vpop.xlane.xlu0 %335
    %v337 = vadd.f32 %v242, %v243
    %338 = vadd.xlane.f32.xlu0 %v337
    %v339 = vpop.xlane.xlu0 %338
    %v340 = vmul.f32 %v246, 0.001953125
    %v341 = vmul.f32 %v249, 0.001953125
    %v342 = vmul.f32 %v252, 0.001953125
    %v343 = vmul.f32 %v255, 0.001953125
    %v344 = vmul.f32 %v258, 0.001953125
    %v345 = vmul.f32 %v261, 0.001953125
    %v346 = vmul.f32 %v264, 0.001953125
    %v347 = vmul.f32 %v267, 0.001953125
    %v348 = vmul.f32 %v270, 0.001953125
    %v349 = vmul.f32 %v273, 0.001953125
    %v350 = vmul.f32 %v276, 0.001953125
    %v351 = vmul.f32 %v279, 0.001953125
    %v352 = vmul.f32 %v282, 0.001953125
    %v353 = vmul.f32 %v285, 0.001953125
    %v354 = vmul.f32 %v288, 0.001953125
    %v355 = vmul.f32 %v291, 0.001953125
    %v356 = vmul.f32 %v294, 0.001953125
    %v357 = vmul.f32 %v297, 0.001953125
    %v358 = vmul.f32 %v300, 0.001953125
    %v359 = vmul.f32 %v303, 0.001953125
    %v360 = vmul.f32 %v306, 0.001953125
    %v361 = vmul.f32 %v309, 0.001953125
    %v362 = vmul.f32 %v312, 0.001953125
    %v363 = vmul.f32 %v315, 0.001953125
    %v364 = vmul.f32 %v318, 0.001953125
    %v365 = vmul.f32 %v321, 0.001953125
    %v366 = vmul.f32 %v324, 0.001953125
    %v367 = vmul.f32 %v327, 0.001953125
    %v368 = vmul.f32 %v330, 0.001953125
    %v369 = vmul.f32 %v333, 0.001953125
    %v370 = vmul.f32 %v336, 0.001953125
    %v371 = vmul.f32 %v339, 0.001953125
    %v372 = vmul.f32 %v340, %v340
    %v373 = vmul.f32 %v341, %v341
    %v374 = vmul.f32 %v342, %v342
    %v375 = vmul.f32 %v343, %v343
    %v376 = vmul.f32 %v344, %v344
    %v377 = vmul.f32 %v345, %v345
    %v378 = vmul.f32 %v346, %v346
    %v379 = vmul.f32 %v347, %v347
    %v380 = vmul.f32 %v348, %v348
    %v381 = vmul.f32 %v349, %v349
    %v382 = vmul.f32 %v350, %v350
    %v383 = vmul.f32 %v351, %v351
    %v384 = vmul.f32 %v352, %v352
    %v385 = vmul.f32 %v353, %v353
    %v386 = vmul.f32 %v354, %v354
    %v387 = vmul.f32 %v355, %v355
    %v388 = vsub.f32 %v356, %v372
    %v389 = vsub.f32 %v357, %v373
    %v390 = vsub.f32 %v358, %v374
    %v391 = vsub.f32 %v359, %v375
    %v392 = vsub.f32 %v360, %v376
    %v393 = vsub.f32 %v361, %v377
    %v394 = vsub.f32 %v362, %v378
    %v395 = vsub.f32 %v363, %v379
    %v396 = vsub.f32 %v364, %v380
    %v397 = vsub.f32 %v365, %v381
    %v398 = vsub.f32 %v366, %v382
    %v399 = vsub.f32 %v367, %v383
    %v400 = vsub.f32 %v368, %v384
    %v401 = vsub.f32 %v369, %v385
    %v402 = vsub.f32 %v370, %v386
    %v403 = vsub.f32 %v371, %v387
    %v404 = vmax.f32 %v388, 0.0
    %v405 = vmax.f32 %v389, 0.0
    %v406 = vmax.f32 %v390, 0.0
    %v407 = vmax.f32 %v391, 0.0
    %v408 = vmax.f32 %v392, 0.0
    %v409 = vmax.f32 %v393, 0.0
    %v410 = vmax.f32 %v394, 0.0
    %v411 = vmax.f32 %v395, 0.0
    %v412 = vmax.f32 %v396, 0.0
    %v413 = vmax.f32 %v397, 0.0
    %v414 = vmax.f32 %v398, 0.0
    %v415 = vmax.f32 %v399, 0.0
    %v416 = vmax.f32 %v400, 0.0
    %v417 = vmax.f32 %v401, 0.0
    %v418 = vmax.f32 %v402, 0.0
    %v419 = vmax.f32 %v403, 0.0
    %v420 = vadd.f32 %v404, 0.0001
    %v421 = vadd.f32 %v405, 0.0001
    %v422 = vadd.f32 %v406, 0.0001
    %v423 = vadd.f32 %v407, 0.0001
    %v424 = vadd.f32 %v408, 0.0001
    %v425 = vadd.f32 %v409, 0.0001
    %v426 = vadd.f32 %v410, 0.0001
    %v427 = vadd.f32 %v411, 0.0001
    %v428 = vadd.f32 %v412, 0.0001
    %v429 = vadd.f32 %v413, 0.0001
    %v430 = vadd.f32 %v414, 0.0001
    %v431 = vadd.f32 %v415, 0.0001
    %v432 = vadd.f32 %v416, 0.0001
    %v433 = vadd.f32 %v417, 0.0001
    %v434 = vadd.f32 %v418, 0.0001
    %v435 = vadd.f32 %v419, 0.0001
    %v436 = vrsqrt.pop %v420
    %v437 = vrsqrt.pop %v421
    %v438 = vrsqrt.pop %v422
    %v439 = vrsqrt.pop %v423
    %v440 = vrsqrt.pop %v424
    %v441 = vrsqrt.pop %v425
    %v442 = vrsqrt.pop %v426
    %v443 = vrsqrt.pop %v427
    %v444 = vrsqrt.pop %v428
    %v445 = vrsqrt.pop %v429
    %v446 = vrsqrt.pop %v430
    %v447 = vrsqrt.pop %v431
    %v448 = vrsqrt.pop %v432
    %v449 = vrsqrt.pop %v433
    %v450 = vrsqrt.pop %v434
    %v451 = vrsqrt.pop %v435
    %s452 = smul.u32 0, 8
    %s453 = scalar_lea.vmem [#allocation5], %s452
    %v454 = vld [vmem:[%s453] sm:$0xff]
    %s455 = scalar_lea.vmem [#allocation7], %s452
    %v456 = vld [vmem:[%s455] sm:$0xff]
    %v457 = vlaneseq
    %v458 = vshrl.u32 %v457, 7
    %v459 = vsub.s32 0, %v458
    %v460 = vrot.slane %v454, %v459
    %462 = vbcast.lane.b32.xlu0 %v460, 256
    %v463 = vpop.permute.xlu0 %462
    %s465 = sor.u32 256, 8
    %466 = vbcast.lane.b32.xlu0 %v460, %s465
    %v467 = vpop.permute.xlu0 %466
    %v468 = vlaneseq
    %v469 = vshrl.u32 %v468, 7
    %v470 = vsub.s32 1, %v469
    %v471 = vrot.slane %v454, %v470
    %473 = vbcast.lane.b32.xlu0 %v471, 256
    %v474 = vpop.permute.xlu0 %473
    %s476 = sor.u32 256, 8
    %477 = vbcast.lane.b32.xlu0 %v471, %s476
    %v478 = vpop.permute.xlu0 %477
    %v479 = vlaneseq
    %v480 = vshrl.u32 %v479, 7
    %v481 = vsub.s32 2, %v480
    %v482 = vrot.slane %v454, %v481
    %484 = vbcast.lane.b32.xlu0 %v482, 256
    %v485 = vpop.permute.xlu0 %484
    %s487 = sor.u32 256, 8
    %488 = vbcast.lane.b32.xlu0 %v482, %s487
    %v489 = vpop.permute.xlu0 %488
    %v490 = vlaneseq
    %v491 = vshrl.u32 %v490, 7
    %v492 = vsub.s32 3, %v491
    %v493 = vrot.slane %v454, %v492
    %495 = vbcast.lane.b32.xlu0 %v493, 256
    %v496 = vpop.permute.xlu0 %495
    %s498 = sor.u32 256, 8
    %499 = vbcast.lane.b32.xlu0 %v493, %s498
    %v500 = vpop.permute.xlu0 %499
    %v501 = vlaneseq
    %v502 = vshrl.u32 %v501, 7
    %v503 = vsub.s32 4, %v502
    %v504 = vrot.slane %v454, %v503
    %506 = vbcast.lane.b32.xlu0 %v504, 256
    %v507 = vpop.permute.xlu0 %506
    %s509 = sor.u32 256, 8
    %510 = vbcast.lane.b32.xlu0 %v504, %s509
    %v511 = vpop.permute.xlu0 %510
    %v512 = vlaneseq
    %v513 = vshrl.u32 %v512, 7
    %v514 = vsub.s32 5, %v513
    %v515 = vrot.slane %v454, %v514
    %517 = vbcast.lane.b32.xlu0 %v515, 256
    %v518 = vpop.permute.xlu0 %517
    %s520 = sor.u32 256, 8
    %521 = vbcast.lane.b32.xlu0 %v515, %s520
    %v522 = vpop.permute.xlu0 %521
    %v523 = vlaneseq
    %v524 = vshrl.u32 %v523, 7
    %v525 = vsub.s32 6, %v524
    %v526 = vrot.slane %v454, %v525
    %528 = vbcast.lane.b32.xlu0 %v526, 256
    %v529 = vpop.permute.xlu0 %528
    %s531 = sor.u32 256, 8
    %532 = vbcast.lane.b32.xlu0 %v526, %s531
    %v533 = vpop.permute.xlu0 %532
    %v534 = vlaneseq
    %v535 = vshrl.u32 %v534, 7
    %v536 = vsub.s32 7, %v535
    %v537 = vrot.slane %v454, %v536
    %539 = vbcast.lane.b32.xlu0 %v537, 256
    %v540 = vpop.permute.xlu0 %539
    %s542 = sor.u32 256, 8
    %543 = vbcast.lane.b32.xlu0 %v537, %s542
    %v544 = vpop.permute.xlu0 %543
    %v545 = vlaneseq
    %v546 = vshrl.u32 %v545, 7
    %v547 = vsub.s32 0, %v546
    %v548 = vrot.slane %v456, %v547
    %550 = vbcast.lane.b32.xlu0 %v548, 256
    %v551 = vpop.permute.xlu0 %550
    %s553 = sor.u32 256, 8
    %554 = vbcast.lane.b32.xlu0 %v548, %s553
    %v555 = vpop.permute.xlu0 %554
    %v556 = vlaneseq
    %v557 = vshrl.u32 %v556, 7
    %v558 = vsub.s32 1, %v557
    %v559 = vrot.slane %v456, %v558
    %561 = vbcast.lane.b32.xlu0 %v559, 256
    %v562 = vpop.permute.xlu0 %561
    %s564 = sor.u32 256, 8
    %565 = vbcast.lane.b32.xlu0 %v559, %s564
    %v566 = vpop.permute.xlu0 %565
    %v567 = vlaneseq
    %v568 = vshrl.u32 %v567, 7
    %v569 = vsub.s32 2, %v568
    %v570 = vrot.slane %v456, %v569
    %572 = vbcast.lane.b32.xlu0 %v570, 256
    %v573 = vpop.permute.xlu0 %572
    %s575 = sor.u32 256, 8
    %576 = vbcast.lane.b32.xlu0 %v570, %s575
    %v577 = vpop.permute.xlu0 %576
    %v578 = vlaneseq
    %v579 = vshrl.u32 %v578, 7
    %v580 = vsub.s32 3, %v579
    %v581 = vrot.slane %v456, %v580
    %583 = vbcast.lane.b32.xlu0 %v581, 256
    %v584 = vpop.permute.xlu0 %583
    %s586 = sor.u32 256, 8
    %587 = vbcast.lane.b32.xlu0 %v581, %s586
    %v588 = vpop.permute.xlu0 %587
    %v589 = vlaneseq
    %v590 = vshrl.u32 %v589, 7
    %v591 = vsub.s32 4, %v590
    %v592 = vrot.slane %v456, %v591
    %594 = vbcast.lane.b32.xlu0 %v592, 256
    %v595 = vpop.permute.xlu0 %594
    %s597 = sor.u32 256, 8
    %598 = vbcast.lane.b32.xlu0 %v592, %s597
    %v599 = vpop.permute.xlu0 %598
    %v600 = vlaneseq
    %v601 = vshrl.u32 %v600, 7
    %v602 = vsub.s32 5, %v601
    %v603 = vrot.slane %v456, %v602
    %605 = vbcast.lane.b32.xlu0 %v603, 256
    %v606 = vpop.permute.xlu0 %605
    %s608 = sor.u32 256, 8
    %609 = vbcast.lane.b32.xlu0 %v603, %s608
    %v610 = vpop.permute.xlu0 %609
    %v611 = vlaneseq
    %v612 = vshrl.u32 %v611, 7
    %v613 = vsub.s32 6, %v612
    %v614 = vrot.slane %v456, %v613
    %616 = vbcast.lane.b32.xlu0 %v614, 256
    %v617 = vpop.permute.xlu0 %616
    %s619 = sor.u32 256, 8
    %620 = vbcast.lane.b32.xlu0 %v614, %s619
    %v621 = vpop.permute.xlu0 %620
    %v622 = vlaneseq
    %v623 = vshrl.u32 %v622, 7
    %v624 = vsub.s32 7, %v623
    %v625 = vrot.slane %v456, %v624
    %627 = vbcast.lane.b32.xlu0 %v625, 256
    %v628 = vpop.permute.xlu0 %627
    %s630 = sor.u32 256, 8
    %631 = vbcast.lane.b32.xlu0 %v625, %s630
    %v632 = vpop.permute.xlu0 %631
    %v633 = vmul.f32 %v436, %v463
    %v634 = vmul.f32 %v437, %v467
    %v635 = vmul.f32 %v438, %v474
    %v636 = vmul.f32 %v439, %v478
    %v637 = vmul.f32 %v440, %v485
    %v638 = vmul.f32 %v441, %v489
    %v639 = vmul.f32 %v442, %v496
    %v640 = vmul.f32 %v443, %v500
    %v641 = vmul.f32 %v444, %v507
    %v642 = vmul.f32 %v445, %v511
    %v643 = vmul.f32 %v446, %v518
    %v644 = vmul.f32 %v447, %v522
    %v645 = vmul.f32 %v448, %v529
    %v646 = vmul.f32 %v449, %v533
    %v647 = vmul.f32 %v450, %v540
    %v648 = vmul.f32 %v451, %v544
    %v649 = vmul.f32 %v340, %v633
    %v650 = vmul.f32 %v341, %v634
    %v651 = vmul.f32 %v342, %v635
    %v652 = vmul.f32 %v343, %v636
    %v653 = vmul.f32 %v344, %v637
    %v654 = vmul.f32 %v345, %v638
    %v655 = vmul.f32 %v346, %v639
    %v656 = vmul.f32 %v347, %v640
    %v657 = vmul.f32 %v348, %v641
    %v658 = vmul.f32 %v349, %v642
    %v659 = vmul.f32 %v350, %v643
    %v660 = vmul.f32 %v351, %v644
    %v661 = vmul.f32 %v352, %v645
    %v662 = vmul.f32 %v353, %v646
    %v663 = vmul.f32 %v354, %v647
    %v664 = vmul.f32 %v355, %v648
    %v665 = vsub.f32 %v551, %v649
    %v666 = vsub.f32 %v555, %v650
    %v667 = vsub.f32 %v562, %v651
    %v668 = vsub.f32 %v566, %v652
    %v669 = vsub.f32 %v573, %v653
    %v670 = vsub.f32 %v577, %v654
    %v671 = vsub.f32 %v584, %v655
    %v672 = vsub.f32 %v588, %v656
    %v673 = vsub.f32 %v595, %v657
    %v674 = vsub.f32 %v599, %v658
    %v675 = vsub.f32 %v606, %v659
    %v676 = vsub.f32 %v610, %v660
    %v677 = vsub.f32 %v617, %v661
    %v678 = vsub.f32 %v621, %v662
    %v679 = vsub.f32 %v628, %v663
    %v680 = vsub.f32 %v632, %v664
    %v681 = vmul.f32 %v52, %v633
    %v682 = vmul.f32 %v53, %v633
    %v683 = vmul.f32 %v54, %v634
    %v684 = vmul.f32 %v55, %v634
    %v685 = vmul.f32 %v56, %v633
    %v686 = vmul.f32 %v57, %v633
    %v687 = vmul.f32 %v58, %v634
    %v688 = vmul.f32 %v59, %v634
    %v689 = vmul.f32 %v60, %v635
    %v690 = vmul.f32 %v61, %v635
    %v691 = vmul.f32 %v62, %v636
    %v692 = vmul.f32 %v63, %v636
    %v693 = vmul.f32 %v64, %v635
    %v694 = vmul.f32 %v65, %v635
    %v695 = vmul.f32 %v66, %v636
    %v696 = vmul.f32 %v67, %v636
    %v697 = vmul.f32 %v68, %v637
    %v698 = vmul.f32 %v69, %v637
    %v699 = vmul.f32 %v70, %v638
    %v700 = vmul.f32 %v71, %v638
    %v701 = vmul.f32 %v72, %v637
    %v702 = vmul.f32 %v73, %v637
    %v703 = vmul.f32 %v74, %v638
    %v704 = vmul.f32 %v75, %v638
    %v705 = vmul.f32 %v76, %v639
    %v706 = vmul.f32 %v77, %v639
    %v707 = vmul.f32 %v78, %v640
    %v708 = vmul.f32 %v79, %v640
    %v709 = vmul.f32 %v80, %v639
    %v710 = vmul.f32 %v81, %v639
    %v711 = vmul.f32 %v82, %v640
    %v712 = vmul.f32 %v83, %v640
    %v713 = vmul.f32 %v84, %v641
    %v714 = vmul.f32 %v85, %v641
    %v715 = vmul.f32 %v86, %v642
    %v716 = vmul.f32 %v87, %v642
    %v717 = vmul.f32 %v88, %v641
    %v718 = vmul.f32 %v89, %v641
    %v719 = vmul.f32 %v90, %v642
    %v720 = vmul.f32 %v91, %v642
    %v721 = vmul.f32 %v92, %v643
    %v722 = vmul.f32 %v93, %v643
    %v723 = vmul.f32 %v94, %v644
    %v724 = vmul.f32 %v95, %v644
    %v725 = vmul.f32 %v96, %v643
    %v726 = vmul.f32 %v97, %v643
    %v727 = vmul.f32 %v98, %v644
    %v728 = vmul.f32 %v99, %v644
    %v729 = vmul.f32 %v100, %v645
    %v730 = vmul.f32 %v101, %v645
    %v731 = vmul.f32 %v102, %v646
    %v732 = vmul.f32 %v103, %v646
    %v733 = vmul.f32 %v104, %v645
    %v734 = vmul.f32 %v105, %v645
    %v735 = vmul.f32 %v106, %v646
    %v736 = vmul.f32 %v107, %v646
    %v737 = vmul.f32 %v108, %v647
    %v738 = vmul.f32 %v109, %v647
    %v739 = vmul.f32 %v110, %v648
    %v740 = vmul.f32 %v111, %v648
    %v741 = vmul.f32 %v112, %v647
    %v742 = vmul.f32 %v113, %v647
    %v743 = vmul.f32 %v114, %v648
    %v744 = vmul.f32 %v115, %v648
    %v745 = vadd.f32 %v681, %v665
    %v746 = vadd.f32 %v682, %v665
    %v747 = vadd.f32 %v683, %v666
    %v748 = vadd.f32 %v684, %v666
    %v749 = vadd.f32 %v685, %v665
    %v750 = vadd.f32 %v686, %v665
    %v751 = vadd.f32 %v687, %v666
    %v752 = vadd.f32 %v688, %v666
    %v753 = vadd.f32 %v689, %v667
    %v754 = vadd.f32 %v690, %v667
    %v755 = vadd.f32 %v691, %v668
    %v756 = vadd.f32 %v692, %v668
    %v757 = vadd.f32 %v693, %v667
    %v758 = vadd.f32 %v694, %v667
    %v759 = vadd.f32 %v695, %v668
    %v760 = vadd.f32 %v696, %v668
    %v761 = vadd.f32 %v697, %v669
    %v762 = vadd.f32 %v698, %v669
    %v763 = vadd.f32 %v699, %v670
    %v764 = vadd.f32 %v700, %v670
    %v765 = vadd.f32 %v701, %v669
    %v766 = vadd.f32 %v702, %v669
    %v767 = vadd.f32 %v703, %v670
    %v768 = vadd.f32 %v704, %v670
    %v769 = vadd.f32 %v705, %v671
    %v770 = vadd.f32 %v706, %v671
    %v771 = vadd.f32 %v707, %v672
    %v772 = vadd.f32 %v708, %v672
    %v773 = vadd.f32 %v709, %v671
    %v774 = vadd.f32 %v710, %v671
    %v775 = vadd.f32 %v711, %v672
    %v776 = vadd.f32 %v712, %v672
    %v777 = vadd.f32 %v713, %v673
    %v778 = vadd.f32 %v714, %v673
    %v779 = vadd.f32 %v715, %v674
    %v780 = vadd.f32 %v716, %v674
    %v781 = vadd.f32 %v717, %v673
    %v782 = vadd.f32 %v718, %v673
    %v783 = vadd.f32 %v719, %v674
    %v784 = vadd.f32 %v720, %v674
    %v785 = vadd.f32 %v721, %v675
    %v786 = vadd.f32 %v722, %v675
    %v787 = vadd.f32 %v723, %v676
    %v788 = vadd.f32 %v724, %v676
    %v789 = vadd.f32 %v725, %v675
    %v790 = vadd.f32 %v726, %v675
    %v791 = vadd.f32 %v727, %v676
    %v792 = vadd.f32 %v728, %v676
    %v793 = vadd.f32 %v729, %v677
    %v794 = vadd.f32 %v730, %v677
    %v795 = vadd.f32 %v731, %v678
    %v796 = vadd.f32 %v732, %v678
    %v797 = vadd.f32 %v733, %v677
    %v798 = vadd.f32 %v734, %v677
    %v799 = vadd.f32 %v735, %v678
    %v800 = vadd.f32 %v736, %v678
    %v801 = vadd.f32 %v737, %v679
    %v802 = vadd.f32 %v738, %v679
    %v803 = vadd.f32 %v739, %v680
    %v804 = vadd.f32 %v740, %v680
    %v805 = vadd.f32 %v741, %v679
    %v806 = vadd.f32 %v742, %v679
    %v807 = vadd.f32 %v743, %v680
    %v808 = vadd.f32 %v744, %v680
    %809 = vst [vmem:[#allocation8] sm:$0xff] %v745
    %810 = vst [vmem:[#allocation8 + $0x8] sm:$0xff] %v746
    %811 = vst [vmem:[#allocation8 + $0x10] sm:$0xff] %v747
    %812 = vst [vmem:[#allocation8 + $0x18] sm:$0xff] %v748
    %813 = vst [vmem:[#allocation8 + $0x20] sm:$0xff] %v749
    %814 = vst [vmem:[#allocation8 + $0x28] sm:$0xff] %v750
    %815 = vst [vmem:[#allocation8 + $0x30] sm:$0xff] %v751
    %816 = vst [vmem:[#allocation8 + $0x38] sm:$0xff] %v752
    %817 = vst [vmem:[#allocation8 + $0x40] sm:$0xff] %v753
    %818 = vst [vmem:[#allocation8 + $0x48] sm:$0xff] %v754
    %819 = vst [vmem:[#allocation8 + $0x50] sm:$0xff] %v755
    %820 = vst [vmem:[#allocation8 + $0x58] sm:$0xff] %v756
    %821 = vst [vmem:[#allocation8 + $0x60] sm:$0xff] %v757
    %822 = vst [vmem:[#allocation8 + $0x68] sm:$0xff] %v758
    %823 = vst [vmem:[#allocation8 + $0x70] sm:$0xff] %v759
    %824 = vst [vmem:[#allocation8 + $0x78] sm:$0xff] %v760
    %825 = vst [vmem:[#allocation8 + $0x80] sm:$0xff] %v761
    %826 = vst [vmem:[#allocation8 + $0x88] sm:$0xff] %v762
    %827 = vst [vmem:[#allocation8 + $0x90] sm:$0xff] %v763
    %828 = vst [vmem:[#allocation8 + $0x98] sm:$0xff] %v764
    %829 = vst [vmem:[#allocation8 + $0xa0] sm:$0xff] %v765
    %830 = vst [vmem:[#allocation8 + $0xa8] sm:$0xff] %v766
    %831 = vst [vmem:[#allocation8 + $0xb0] sm:$0xff] %v767
    %832 = vst [vmem:[#allocation8 + $0xb8] sm:$0xff] %v768
    %833 = vst [vmem:[#allocation8 + $0xc0] sm:$0xff] %v769
    %834 = vst [vmem:[#allocation8 + $0xc8] sm:$0xff] %v770
    %835 = vst [vmem:[#allocation8 + $0xd0] sm:$0xff] %v771
    %836 = vst [vmem:[#allocation8 + $0xd8] sm:$0xff] %v772
    %837 = vst [vmem:[#allocation8 + $0xe0] sm:$0xff] %v773
    %838 = vst [vmem:[#allocation8 + $0xe8] sm:$0xff] %v774
    %839 = vst [vmem:[#allocation8 + $0xf0] sm:$0xff] %v775
    %840 = vst [vmem:[#allocation8 + $0xf8] sm:$0xff] %v776
    %841 = vst [vmem:[#allocation8 + $0x100] sm:$0xff] %v777
    %842 = vst [vmem:[#allocation8 + $0x108] sm:$0xff] %v778
    %843 = vst [vmem:[#allocation8 + $0x110] sm:$0xff] %v779
    %844 = vst [vmem:[#allocation8 + $0x118] sm:$0xff] %v780
    %845 = vst [vmem:[#allocation8 + $0x120] sm:$0xff] %v781
    %846 = vst [vmem:[#allocation8 + $0x128] sm:$0xff] %v782
    %847 = vst [vmem:[#allocation8 + $0x130] sm:$0xff] %v783
    %848 = vst [vmem:[#allocation8 + $0x138] sm:$0xff] %v784
    %849 = vst [vmem:[#allocation8 + $0x140] sm:$0xff] %v785
    %850 = vst [vmem:[#allocation8 + $0x148] sm:$0xff] %v786
    %851 = vst [vmem:[#allocation8 + $0x150] sm:$0xff] %v787
    %852 = vst [vmem:[#allocation8 + $0x158] sm:$0xff] %v788
    %853 = vst [vmem:[#allocation8 + $0x160] sm:$0xff] %v789
    %854 = vst [vmem:[#allocation8 + $0x168] sm:$0xff] %v790
    %855 = vst [vmem:[#allocation8 + $0x170] sm:$0xff] %v791
    %856 = vst [vmem:[#allocation8 + $0x178] sm:$0xff] %v792
    %857 = vst [vmem:[#allocation8 + $0x180] sm:$0xff] %v793
    %858 = vst [vmem:[#allocation8 + $0x188] sm:$0xff] %v794
    %859 = vst [vmem:[#allocation8 + $0x190] sm:$0xff] %v795
    %860 = vst [vmem:[#allocation8 + $0x198] sm:$0xff] %v796
    %861 = vst [vmem:[#allocation8 + $0x1a0] sm:$0xff] %v797
    %862 = vst [vmem:[#allocation8 + $0x1a8] sm:$0xff] %v798
    %863 = vst [vmem:[#allocation8 + $0x1b0] sm:$0xff] %v799
    %864 = vst [vmem:[#allocation8 + $0x1b8] sm:$0xff] %v800
    %865 = vst [vmem:[#allocation8 + $0x1c0] sm:$0xff] %v801
    %866 = vst [vmem:[#allocation8 + $0x1c8] sm:$0xff] %v802
    %867 = vst [vmem:[#allocation8 + $0x1d0] sm:$0xff] %v803
    %868 = vst [vmem:[#allocation8 + $0x1d8] sm:$0xff] %v804
    %869 = vst [vmem:[#allocation8 + $0x1e0] sm:$0xff] %v805
    %870 = vst [vmem:[#allocation8 + $0x1e8] sm:$0xff] %v806
    %871 = vst [vmem:[#allocation8 + $0x1f0] sm:$0xff] %v807
    %872 = vst [vmem:[#allocation8 + $0x1f8] sm:$0xff] %v808
    // Predicated region
    $region26: #{tpu_custom_call.1} parent=1 // pred_check
      _
    $region27: #{tpu_custom_call.1} parent=1 // pred_check_branch
      %874 = sbr.rel (0) target = $region29
    $region28: #{tpu_custom_call.1} parent=1 // pred_region
      %s876 = ssub.s32 8192, 8192
      %877 = vsyncadd [#allocation4], %s876
      %s878 = sshll.u32 [#allocation8], 4
      %s879 = int_to_ptr.vmem [resolvable:$true] %s878
      %884 = dma.vmem_to_hbm [thread:$0]  %s879, 8192, %s3, [#allocation4], 256, 256, 16
    $region29: #{tpu_custom_call.1} parent=1 // pred_fallthru
      _
    // Predicated region
    $region30: #{tpu_custom_call.1} parent=1 // pred_check
      _
    $region31: #{tpu_custom_call.1} parent=1 // pred_check_branch
      %886 = sbr.rel (0) target = $region33
    $region32: #{tpu_custom_call.1} parent=1 // pred_region
      %887 = dma.done [#allocation4], 8192
    $region33: #{tpu_custom_call.1} parent=1 // pred_fallthru
      _
    %888 = vsyncpa [#allocation3], 1
    %889 = vsyncpa [#allocation6], 1
    %890 = vsyncpa [#allocation4], 1

</llo_original>
